<compile_context>
chip_gen: v7x
topology: tpu7x:2x2x1
jax: 0.10.0
libtpu: 0.0.40
codegen_flags: <defaults>
</compile_context>

<pallas_src>
import functools

import jax
import jax.numpy as jnp
from jax import lax
from jax.experimental import pallas as pl
from jax.experimental.pallas import tpu as pltpu

_SQRT_HALF = 0.7071067811865476
_MIB = 1024 * 1024


def _round_up(x, m):
    return (x + m - 1) // m * m


def _erf_f32(x):
    """erf via Abramowitz & Stegun 7.1.26 (|err| < 1.5e-7).

    Built only from mul/add/div/exp/where so it lowers in Mosaic without
    depending on an erf primitive lowering rule.
    """
    a1, a2, a3, a4, a5 = (0.254829592, -0.284496736, 1.421413741,
                          -1.453152027, 1.061405429)
    p = 0.3275911
    ax = jnp.abs(x)
    t = 1.0 / (1.0 + p * ax)
    poly = ((((a5 * t + a4) * t + a3) * t + a2) * t + a1) * t
    y = 1.0 - poly * jnp.exp(-(ax * ax))
    return jnp.where(x >= 0, y, -y)


def _embed_kernel(x_ref, w_ref, p_ref, o_ref, *, n_true, n_pad):
    # x_ref: (tile_m, K)      bf16 patch rows (K == Cin*P*P, un-padded)
    # w_ref: (K, Np)          bf16 flattened conv weight (cols zero-padded past n_true)
    # p_ref: (3, Np)          f32  [conv bias; ln gamma; ln beta], zero-padded past n_true
    # o_ref: (tile_m, n_true) output
    x = x_ref[...]
    w = w_ref[...]
    # Conv-as-matmul on the MXU, f32 accumulation.
    y = jnp.dot(x, w, preferred_element_type=jnp.float32) + p_ref[0:1, :]
    # Exact (erf) GELU. Padded columns stay exactly 0 (w/b pads are 0, GELU(0)=0).
    y = 0.5 * y * (1.0 + _erf_f32(y * jnp.float32(_SQRT_HALF)))
    # LayerNorm over the TRUE embedding width n_true, eps = 1e-5, all in f32.
    inv_n = jnp.float32(1.0 / n_true)
    mean = jnp.sum(y, axis=-1, keepdims=True) * inv_n          # pad cols contribute 0
    d = y - mean
    ssq = jnp.sum(d * d, axis=-1, keepdims=True)
    if n_pad:
        # Each of the n_pad zero columns contributes exactly mean^2 to ssq.
        # Exact analytic correction -> no per-element iota/select mask needed.
        ssq = ssq - jnp.float32(n_pad) * (mean * mean)
    yhat = d * lax.rsqrt(ssq * inv_n + jnp.float32(1e-5))       # rsqrt -> EUP slot
    out = yhat * p_ref[1:2, :] + p_ref[2:3, :]
    o_ref[...] = out[:, :n_true].astype(o_ref.dtype)


def _patch_embed_pallas(x_patches, w_flat, bias, gamma, beta, *,
                        tile_m=1024, out_dtype=jnp.bfloat16):
    """x_patches: (M, K), w_flat: (K, N) -> (M, N) = LayerNorm(GELU(x @ w + b))."""
    M, K = x_patches.shape
    N = w_flat.shape[1]
    Np = _round_up(N, 128)
    Kp = _round_up(K, 128)            # VMEM lane-layout estimate only (K is not padded in HBM)
    out_bytes = jnp.dtype(out_dtype).itemsize

    try:
        vmem_cap = int(pltpu.get_tpu_info().vmem_capacity_bytes)
    except Exception:                 # conservative fallback = v7x per-core VMEM
        vmem_cap = 64 * _MIB

    # Generation-aware budget: ~40 MiB on v7x (64 MiB physical VMEM),
    # up to ~96 MiB on v5e/v6e (128 MiB).
    vmem_budget = max(24 * _MIB, min(vmem_cap - 24 * _MIB, 96 * _MIB))

    def _vmem_bytes(tm):
        return (2 * tm * Kp * 2              # double-buffered bf16 x tiles
                + Kp * Np * 2                # weight, single buffer (Buffered(1))
                + 8 * Np * 4                 # packed bias/gamma/beta, single buffer
                + 2 * tm * Np * out_bytes    # double-buffered output tiles
                + 2 * tm * Np * 4)           # f32 intermediates (y, d) materialized by Mosaic

    m_rounded = _round_up(M, 128)
    tile_m = min(_round_up(max(int(tile_m), 128), 128), m_rounded)
    while tile_m > 128 and _vmem_bytes(tile_m) > vmem_budget:
        tile_m -= 128
    # Keep >= 2 grid steps whenever M allows it so both v7x TensorCores get work
    # (the single "parallel" axis is what shards across cores).
    tile_m = min(tile_m, max(128, (m_rounded // 256) * 128))

    Mp = _round_up(M, tile_m)
    grid = Mp // tile_m

    x_p = x_patches.astype(jnp.bfloat16)     # no-op if already bf16
    if Mp != M:
        x_p = jnp.pad(x_p, ((0, Mp - M), (0, 0)))       # rows only; K stays un-padded
    w_p = jnp.pad(w_flat, ((0, 0), (0, Np - N))).astype(jnp.bfloat16)
    params_p = jnp.pad(jnp.stack([bias, gamma, beta]).astype(jnp.float32),
                       ((0, 0), (0, Np - N)))

    cost = pl.CostEstimate(
        flops=2 * Mp * K * Np,
        transcendentals=Mp * Np + 2 * Mp,
        bytes_accessed=(Mp * K * 2 + K * Np * 2 + 3 * Np * 4 + Mp * N * out_bytes),
    )

    vmem_limit = int(min(max(vmem_cap - 16 * _MIB, 32 * _MIB),
                         max(32 * _MIB, _vmem_bytes(tile_m) + 8 * _MIB)))

    out = pl.pallas_call(
        functools.partial(_embed_kernel, n_true=N, n_pad=Np - N),
        out_shape=jax.ShapeDtypeStruct((Mp, N), out_dtype),
        grid_spec=pltpu.PrefetchScalarGridSpec(
            num_scalar_prefetch=0,
            grid=(grid,),
            in_specs=[
                # Streaming patch rows: last dim == full K (legal; no HBM K-pad pass).
                pl.BlockSpec((tile_m, K), lambda i: (i, 0)),
                # Constant-index operands: fetched once, single VMEM buffer each.
                pl.BlockSpec((K, Np), lambda i: (0, 0),
                             pipeline_mode=pl.Buffered(1)),
                pl.BlockSpec((3, Np), lambda i: (0, 0),
                             pipeline_mode=pl.Buffered(1)),
            ],
            # True-N output block (== full array last dim): padded columns never
            # reach HBM, so no post-kernel column-slice pass.
            out_specs=pl.BlockSpec((tile_m, N), lambda i: (i, 0)),
        ),
        compiler_params=pltpu.CompilerParams(
            dimension_semantics=("parallel",),
            vmem_limit_bytes=vmem_limit,
        ),
        cost_estimate=cost,
    )(x_p, w_p, params_p)

    return out[:M]


def sourcetype_embedding_2d(values, avail_mask, params, patch_size,
                            tile_m=1024, out_dtype=jnp.bfloat16):
    """JAX/Pallas equivalent of SourcetypeEmbedding2d.forward.

    Args:
      values:     (B, C, H, W) float
      avail_mask: (B, H, W)    float
      params: dict with
        'conv_w': (values_dim, C+1, P, P)  Conv2d weight
        'conv_b': (values_dim,)            Conv2d bias
        'ln_g':   (values_dim,)            LayerNorm weight
        'ln_b':   (values_dim,)            LayerNorm bias
      out_dtype: output dtype (default bf16 for HBM-bandwidth; pass jnp.float32
        to match the PyTorch module bit-for-bit in dtype).
    Returns:
      (B, num_patches, values_dim) in out_dtype.
    """
    P = patch_size
    B, C, H, W = values.shape
    # 1. Concat the availability mask as an extra channel.
    x = jnp.concatenate([values, avail_mask[:, None, :, :].astype(values.dtype)],
                        axis=1)                                     # (B, C+1, H, W)
    # Cast to bf16 BEFORE the patch rearrangement: the transpose/pad pass over the
    # activations (a second full HBM pass) then moves half the bytes.
    x = x.astype(jnp.bfloat16)
    Cin = C + 1

    # 2. Zero-pad H, W up to multiples of the patch size.
    pad_h = (-H) % P
    pad_w = (-W) % P
    x = jnp.pad(x, ((0, 0), (0, 0), (0, pad_h), (0, pad_w)))
    Hp = (H + pad_h) // P
    Wp = (W + pad_w) // P

    # 3. (B, Cin, Hp, P, Wp, P) -> (B, Hp, Wp, Cin, P, P) -> (B*Hp*Wp, Cin*P*P).
    #    Per-patch flatten order (c, kh, kw) matches Conv2d weight (out, in, kh, kw).
    x = x.reshape(B, Cin, Hp, P, Wp, P).transpose(0, 2, 4, 1, 3, 5)
    x_patches = x.reshape(B * Hp * Wp, Cin * P * P)

    conv_w = params["conv_w"]
    values_dim = conv_w.shape[0]
    w_flat = conv_w.reshape(values_dim, Cin * P * P).T

    out = _patch_embed_pallas(
        x_patches, w_flat, params["conv_b"], params["ln_g"], params["ln_b"],
        tile_m=tile_m, out_dtype=out_dtype)
    return out.reshape(B, Hp * Wp, values_dim)


def _reference(values, avail_mask, params, patch_size):
    """Pure-JAX f32 reference (independent path: lax conv)."""
    P = patch_size
    x = jnp.concatenate([values, avail_mask[:, None, :, :]], axis=1)
    pad_h = (-x.shape[2]) % P
    pad_w = (-x.shape[3]) % P
    x = jnp.pad(x, ((0, 0), (0, 0), (0, pad_h), (0, pad_w)))
    y = lax.conv_general_dilated(
        x, params["conv_w"], (P, P), "VALID",
        dimension_numbers=("NCHW", "OIHW", "NCHW"))
    y = y + params["conv_b"][None, :, None, None]
    y = 0.5 * y * (1.0 + lax.erf(y * _SQRT_HALF))
    B, D, Hp, Wp = y.shape
    y = y.transpose(0, 2, 3, 1).reshape(B, Hp * Wp, D)
    mean = jnp.mean(y, axis=-1, keepdims=True)
    var = jnp.mean((y - mean) ** 2, axis=-1, keepdims=True)
    y = (y - mean) * lax.rsqrt(var + 1e-5)
    return y * params["ln_g"] + params["ln_b"]


if __name__ == "__main__":
    # Small deterministic example: B=2, C=4, H=W=16, patch_size=4, values_dim=32
    B, C, H, W = 2, 4, 16, 16
    patch_size = 4
    values_dim = 32
    Cin = C + 1

    key = jax.random.PRNGKey(0)
    k1, k2, k3, k4, k5, k6 = jax.random.split(key, 6)

    values = jax.random.normal(k1, (B, C, H, W), dtype=jnp.float32)
    avail_mask = (jax.random.uniform(k2, (B, H, W)) > 0.3).astype(jnp.float32)

    fan_in = Cin * patch_size * patch_size
    bound = 1.0 / jnp.sqrt(jnp.float32(fan_in))
    params = {
        "conv_w": jax.random.uniform(
            k3, (values_dim, Cin, patch_size, patch_size),
            minval=-bound, maxval=bound, dtype=jnp.float32),
        "conv_b": jax.random.uniform(
            k4, (values_dim,), minval=-bound, maxval=bound, dtype=jnp.float32),
        "ln_g": 1.0 + 0.1 * jax.random.normal(k5, (values_dim,), dtype=jnp.float32),
        "ln_b": 0.1 * jax.random.normal(k6, (values_dim,), dtype=jnp.float32),
    }

    fn = jax.jit(functools.partial(sourcetype_embedding_2d, patch_size=patch_size))
    out = fn(values, avail_mask, params)
    out = jax.block_until_ready(out)

    expected_patches = (H // patch_size) * (W // patch_size)
    assert out.shape == (B, expected_patches, values_dim), out.shape
    assert bool(jnp.all(jnp.isfinite(out.astype(jnp.float32))))

    # Numerical check vs. a pure-JAX f32 reference.
    # (bf16 MXU inputs + bf16 output -> loose tolerance.)
    ref = _reference(values, avail_mask, params, patch_size)
    max_diff = float(jnp.max(jnp.abs(out.astype(jnp.float32) - ref)))
    assert max_diff < 1.5e-1, f"max abs diff vs reference too large: {max_diff}"

    print("KERNEL_OK")
</pallas_src>

<mosaic_0001>
module attributes {stable_mosaic.version = 11 : i64} {
  func.func @_embed_kernel(%arg0: i32, %arg1: memref<128x80xbf16, #tpu.memory_space<vmem>>, %arg2: memref<80x128xbf16, #tpu.memory_space<vmem>>, %arg3: memref<3x128xf32, #tpu.memory_space<vmem>>, %arg4: memref<128x32xbf16, #tpu.memory_space<vmem>>) attributes {dimension_semantics = [#tpu.dimension_semantics<parallel>], iteration_bounds = array<i64: 1>, scalar_prefetch = 0 : i64, scratch_operands = 0 : i64, tpu.core_type = #tpu.core_type<tc>, window_params = [{transform_indices = @transform_0, window_bounds = array<i64: 128, 80>}, {pipeline_mode = #tpu.pipeline_mode<synchronous>, transform_indices = @transform_1, window_bounds = array<i64: 80, 128>}, {pipeline_mode = #tpu.pipeline_mode<synchronous>, transform_indices = @transform_2, window_bounds = array<i64: 3, 128>}, {transform_indices = @transform_3, window_bounds = array<i64: 128, 32>}]} {
    %c0 = arith.constant 0 : index
    %c0_0 = arith.constant 0 : index
    %0 = vector.load %arg1[%c0, %c0_0] : memref<128x80xbf16, #tpu.memory_space<vmem>>, vector<128x80xbf16>
    %c0_1 = arith.constant 0 : index
    %c0_2 = arith.constant 0 : index
    %1 = vector.load %arg2[%c0_1, %c0_2] : memref<80x128xbf16, #tpu.memory_space<vmem>>, vector<80x128xbf16>
    %cst = arith.constant dense<0.000000e+00> : vector<128x128xf32>
    %2 = tpu.matmul %0, %1, %cst {dimension_numbers = #tpu.dot_dimension_numbers<[1], [0], [0], [1], [0, 0, 1, 1], [], []>} : vector<128x80xbf16>, vector<80x128xbf16>, vector<128x128xf32> -> vector<128x128xf32>
    %c0_3 = arith.constant 0 : index
    %c0_4 = arith.constant 0 : index
    %3 = vector.load %arg3[%c0_3, %c0_4] : memref<3x128xf32, #tpu.memory_space<vmem>>, vector<1x128xf32>
    %4 = vector.broadcast %3 : vector<1x128xf32> to vector<128x128xf32>
    %5 = arith.addf %2, %4 : vector<128x128xf32>
    %cst_5 = arith.constant 5.000000e-01 : f32
    %6 = vector.broadcast %cst_5 : f32 to vector<128x128xf32>
    %7 = arith.mulf %6, %5 : vector<128x128xf32>
    %cst_6 = arith.constant 0.707106769 : f32
    %8 = vector.broadcast %cst_6 : f32 to vector<128x128xf32>
    %9 = arith.mulf %5, %8 : vector<128x128xf32>
    %10 = math.absf %9 : vector<128x128xf32>
    %cst_7 = arith.constant 0.327591091 : f32
    %11 = vector.broadcast %cst_7 : f32 to vector<128x128xf32>
    %12 = arith.mulf %11, %10 : vector<128x128xf32>
    %cst_8 = arith.constant 1.000000e+00 : f32
    %13 = vector.broadcast %cst_8 : f32 to vector<128x128xf32>
    %14 = arith.addf %13, %12 : vector<128x128xf32>
    %cst_9 = arith.constant 1.000000e+00 : f32
    %15 = vector.broadcast %cst_9 : f32 to vector<128x128xf32>
    %16 = arith.divf %15, %14 : vector<128x128xf32>
    %cst_10 = arith.constant 1.06140542 : f32
    %17 = vector.broadcast %cst_10 : f32 to vector<128x128xf32>
    %18 = arith.mulf %17, %16 : vector<128x128xf32>
    %cst_11 = arith.constant -1.45315206 : f32
    %19 = vector.broadcast %cst_11 : f32 to vector<128x128xf32>
    %20 = arith.addf %18, %19 : vector<128x128xf32>
    %21 = arith.mulf %20, %16 : vector<128x128xf32>
    %cst_12 = arith.constant 1.42141378 : f32
    %22 = vector.broadcast %cst_12 : f32 to vector<128x128xf32>
    %23 = arith.addf %21, %22 : vector<128x128xf32>
    %24 = arith.mulf %23, %16 : vector<128x128xf32>
    %cst_13 = arith.constant -0.284496725 : f32
    %25 = vector.broadcast %cst_13 : f32 to vector<128x128xf32>
    %26 = arith.addf %24, %25 : vector<128x128xf32>
    %27 = arith.mulf %26, %16 : vector<128x128xf32>
    %cst_14 = arith.constant 0.254829586 : f32
    %28 = vector.broadcast %cst_14 : f32 to vector<128x128xf32>
    %29 = arith.addf %27, %28 : vector<128x128xf32>
    %30 = arith.mulf %29, %16 : vector<128x128xf32>
    %31 = arith.mulf %10, %10 : vector<128x128xf32>
    %cst_15 = arith.constant 0.000000e+00 : f32
    %32 = vector.broadcast %cst_15 : f32 to vector<128x128xf32>
    %33 = arith.subf %32, %31 : vector<128x128xf32>
    %34 = math.exp %33 : vector<128x128xf32>
    %35 = arith.mulf %30, %34 : vector<128x128xf32>
    %cst_16 = arith.constant 1.000000e+00 : f32
    %36 = vector.broadcast %cst_16 : f32 to vector<128x128xf32>
    %37 = arith.subf %36, %35 : vector<128x128xf32>
    %cst_17 = arith.constant 0.000000e+00 : f32
    %38 = vector.broadcast %cst_17 : f32 to vector<128x128xf32>
    %39 = arith.cmpf oge, %9, %38 : vector<128x128xf32>
    %cst_18 = arith.constant 0.000000e+00 : f32
    %40 = vector.broadcast %cst_18 : f32 to vector<128x128xf32>
    %41 = arith.subf %40, %37 : vector<128x128xf32>
    %42 = arith.select %39, %37, %41 : vector<128x128xi1>, vector<128x128xf32>
    %cst_19 = arith.constant 1.000000e+00 : f32
    %43 = vector.broadcast %cst_19 : f32 to vector<128x128xf32>
    %44 = arith.addf %43, %42 : vector<128x128xf32>
    %45 = arith.mulf %7, %44 : vector<128x128xf32>
    %cst_20 = arith.constant dense<0.000000e+00> : vector<128xf32>
    %46 = vector.multi_reduction <add>, %45, %cst_20 [1] : vector<128x128xf32> to vector<128xf32>
    %47 = vector.shape_cast %46 : vector<128xf32> to vector<128x1xf32>
    %cst_21 = arith.constant 3.125000e-02 : f32
    %48 = vector.broadcast %cst_21 : f32 to vector<128x1xf32>
    %49 = arith.mulf %47, %48 : vector<128x1xf32>
    %50 = vector.broadcast %49 : vector<128x1xf32> to vector<128x128xf32>
    %51 = arith.subf %45, %50 : vector<128x128xf32>
    %52 = arith.mulf %51, %51 : vector<128x128xf32>
    %cst_22 = arith.constant dense<0.000000e+00> : vector<128xf32>
    %53 = vector.multi_reduction <add>, %52, %cst_22 [1] : vector<128x128xf32> to vector<128xf32>
    %54 = vector.shape_cast %53 : vector<128xf32> to vector<128x1xf32>
    %55 = arith.mulf %49, %49 : vector<128x1xf32>
    %cst_23 = arith.constant 9.600000e+01 : f32
    %56 = vector.broadcast %cst_23 : f32 to vector<128x1xf32>
    %57 = arith.mulf %56, %55 : vector<128x1xf32>
    %58 = arith.subf %54, %57 : vector<128x1xf32>
    %cst_24 = arith.constant 3.125000e-02 : f32
    %59 = vector.broadcast %cst_24 : f32 to vector<128x1xf32>
    %60 = arith.mulf %58, %59 : vector<128x1xf32>
    %cst_25 = arith.constant 9.99999974E-6 : f32
    %61 = vector.broadcast %cst_25 : f32 to vector<128x1xf32>
    %62 = arith.addf %60, %61 : vector<128x1xf32>
    %63 = math.rsqrt %62 : vector<128x1xf32>
    %64 = vector.broadcast %63 : vector<128x1xf32> to vector<128x128xf32>
    %65 = arith.mulf %51, %64 : vector<128x128xf32>
    %c1 = arith.constant 1 : index
    %c0_26 = arith.constant 0 : index
    %66 = vector.load %arg3[%c1, %c0_26] : memref<3x128xf32, #tpu.memory_space<vmem>>, vector<1x128xf32>
    %67 = vector.broadcast %66 : vector<1x128xf32> to vector<128x128xf32>
    %68 = arith.mulf %65, %67 : vector<128x128xf32>
    %c2 = arith.constant 2 : index
    %c0_27 = arith.constant 0 : index
    %69 = vector.load %arg3[%c2, %c0_27] : memref<3x128xf32, #tpu.memory_space<vmem>>, vector<1x128xf32>
    %70 = vector.broadcast %69 : vector<1x128xf32> to vector<128x128xf32>
    %71 = arith.addf %68, %70 : vector<128x128xf32>
    %72 = vector.extract_strided_slice %71 {offsets = [0, 0], sizes = [128, 32], strides = [1, 1]} : vector<128x128xf32> to vector<128x32xf32>
    %73 = arith.truncf %72 : vector<128x32xf32> to vector<128x32xbf16>
    %c0_28 = arith.constant 0 : index
    %c0_29 = arith.constant 0 : index
    %74 = vector.load %arg4[%c0_28, %c0_29] : memref<128x32xbf16, #tpu.memory_space<vmem>>, vector<128x32xbf16>
    tpu.vector_store %arg4[%c0_28, %c0_29], %73 {strides = array<i32>} : memref<128x32xbf16, #tpu.memory_space<vmem>>, vector<128x32xbf16>,
    return
  }
  func.func @transform_0(%arg0: i32) -> (i32, i32) {
    %c0_i32 = arith.constant 0 : i32
    %c0_i32_0 = arith.constant 0 : i32
    return %arg0, %c0_i32 : i32, i32
  }
  func.func @transform_1(%arg0: i32) -> (i32, i32) {
    %c0_i32 = arith.constant 0 : i32
    %c0_i32_0 = arith.constant 0 : i32
    %c0_i32_1 = arith.constant 0 : i32
    return %c0_i32, %c0_i32_0 : i32, i32
  }
  func.func @transform_2(%arg0: i32) -> (i32, i32) {
    %c0_i32 = arith.constant 0 : i32
    %c0_i32_0 = arith.constant 0 : i32
    %c0_i32_1 = arith.constant 0 : i32
    return %c0_i32, %c0_i32_0 : i32, i32
  }
  func.func @transform_3(%arg0: i32) -> (i32, i32) {
    %c0_i32 = arith.constant 0 : i32
    %c0_i32_0 = arith.constant 0 : i32
    return %arg0, %c0_i32 : i32, i32
  }
}

</mosaic_0001>

<llo_original>
// kernel: sourcetype_embedding_2d.1
$region0: #{sourcetype_embedding_2d.1}
  #allocation0 [shape = 'u32[]', space=smem, size = 0x4, offset = 0x4, fixed_abs, tag = 'smem constant byte address 0x4 - core index']
  #allocation1 [shape = 'u32[144,128]{1,0:T(1,128)}', space=vmem, size = 0x12000, scoped, tag = 'internal scratch']
  %s0 = inlined_call_operand.vmem [shape: bf16[128,80], index: 0, kind: input, shape index: {}]
  %s1 = inlined_call_operand.vmem [shape: bf16[80,128], index: 1, kind: input, shape index: {}]
  %s2 = inlined_call_operand.vmem [shape: f32[3,128], index: 2, kind: input, shape index: {}]
  %s3 = inlined_call_operand.vmem [shape: bf16[128,32], index: 3, kind: output, shape index: {}]
  %s4 = sld [smem:[#allocation0]]
  $region22: #{sourcetype_embedding_2d.1} parent=0
    _
  %s6 = ssub.s32 1, %s4
  %s7 = scalar_select 0, %s6, %s4
  // Predicated region
  $region2: #{sourcetype_embedding_2d.1} parent=0 // pred_check
    _
  $region3: #{sourcetype_embedding_2d.1} parent=0 // pred_check_branch
    %9 = sbr.rel (0) target = $region5
  $region4: #{sourcetype_embedding_2d.1} parent=0 // pred_region
    _
  $region5: #{sourcetype_embedding_2d.1} parent=0 // pred_fallthru
    _
  // Predicated region
  $region6: #{sourcetype_embedding_2d.1} parent=0 // pred_check
    _
  $region7: #{sourcetype_embedding_2d.1} parent=0 // pred_check_branch
    %11 = sbr.rel (0) target = $region9
  $region8: #{sourcetype_embedding_2d.1} parent=0 // pred_region
    _
  $region9: #{sourcetype_embedding_2d.1} parent=0 // pred_fallthru
    _
  // Predicated region
  $region10: #{sourcetype_embedding_2d.1} parent=0 // pred_check
    _
  $region11: #{sourcetype_embedding_2d.1} parent=0 // pred_check_branch
    %13 = sbr.rel (0) target = $region13
  $region12: #{sourcetype_embedding_2d.1} parent=0 // pred_region
    _
  $region13: #{sourcetype_embedding_2d.1} parent=0 // pred_fallthru
    _
  %v15 = vld [vmem:[%s0] sm:$0xf]
  %v16 = vld [vmem:[%s0 + $0x4] sm:$0xf]
  %v17 = vld [vmem:[%s0 + $0x8] sm:$0xf]
  %v18 = vld [vmem:[%s0 + $0xc] sm:$0xf]
  %v19 = vld [vmem:[%s0 + $0x10] sm:$0xf]
  %v20 = vld [vmem:[%s0 + $0x14] sm:$0xf]
  %v21 = vld [vmem:[%s0 + $0x18] sm:$0xf]
  %v22 = vld [vmem:[%s0 + $0x1c] sm:$0xf]
  %v23 = vld [vmem:[%s0 + $0x20] sm:$0xf]
  %v24 = vld [vmem:[%s0 + $0x24] sm:$0xf]
  %v25 = vld [vmem:[%s0 + $0x28] sm:$0xf]
  %v26 = vld [vmem:[%s0 + $0x2c] sm:$0xf]
  %v27 = vld [vmem:[%s0 + $0x30] sm:$0xf]
  %v28 = vld [vmem:[%s0 + $0x34] sm:$0xf]
  %v29 = vld [vmem:[%s0 + $0x38] sm:$0xf]
  %v30 = vld [vmem:[%s0 + $0x3c] sm:$0xf]
  %v31 = vld [vmem:[%s1] sm:$0xf]
  %v32 = vld [vmem:[%s1 + $0x4] sm:$0xf]
  %v33 = vld [vmem:[%s1 + $0x8] sm:$0xf]
  %v34 = vld [vmem:[%s1 + $0xc] sm:$0xf]
  %v35 = vld [vmem:[%s1 + $0x10] sm:$0xf]
  %v36 = vld [vmem:[%s1 + $0x14] sm:$0xf]
  %v37 = vld [vmem:[%s1 + $0x18] sm:$0xf]
  %v38 = vld [vmem:[%s1 + $0x1c] sm:$0xf]
  %v39 = vld [vmem:[%s1 + $0x20] sm:$0xf]
  %v40 = vld [vmem:[%s1 + $0x24] sm:$0xf]
  %v41 = vld [vmem:[%s2] sm:$0x1]
  %v42 = vlaneseq
  %v43 = vshrl.u32 %v42, 7
  %v44 = vsub.s32 0, %v43
  %v45 = vrot.slane %v41, %v44
  %v62 = vunpack.c.l.b16 %v15
  %v63 = vunpack.c.l.b16 %v16
  %v64 = vunpack.c.l.b16 %v17
  %v65 = vunpack.c.l.b16 %v18
  %v66 = vunpack.c.l.b16 %v19
  %v67 = vunpack.c.l.b16 %v20
  %v68 = vunpack.c.l.b16 %v21
  %v69 = vunpack.c.l.b16 %v22
  %v70 = vunpack.c.l.b16 %v23
  %v71 = vunpack.c.l.b16 %v24
  %v72 = vunpack.c.l.b16 %v25
  %v73 = vunpack.c.l.b16 %v26
  %v74 = vunpack.c.l.b16 %v27
  %v75 = vunpack.c.l.b16 %v28
  %v76 = vunpack.c.l.b16 %v29
  %v77 = vunpack.c.l.b16 %v30
  %v78 = vpack.c.b16 %v63, %v62
  %v79 = vpack.c.b16 %v65, %v64
  %v80 = vpack.c.b16 %v67, %v66
  %v81 = vpack.c.b16 %v69, %v68
  %v82 = vpack.c.b16 %v71, %v70
  %v83 = vpack.c.b16 %v73, %v72
  %v84 = vpack.c.b16 %v75, %v74
  %v85 = vpack.c.b16 %v77, %v76
  %v96 = vunpack.c.l.b16 %v31
  %v97 = vunpack.c.l.b16 %v32
  %v98 = vunpack.c.l.b16 %v33
  %v99 = vunpack.c.l.b16 %v34
  %v100 = vunpack.c.l.b16 %v35
  %v101 = vunpack.c.l.b16 %v36
  %v102 = vunpack.c.l.b16 %v37
  %v103 = vunpack.c.l.b16 %v38
  %v104 = vunpack.c.l.b16 %v39
  %v105 = vunpack.c.l.b16 %v40
  %v106 = vpack.c.b16 %v97, %v96
  %v107 = vpack.c.b16 %v99, %v98
  %v108 = vpack.c.b16 %v101, %v100
  %v109 = vpack.c.b16 %v103, %v102
  %v110 = vpack.c.b16 %v105, %v104
  %vm116 = vcmask 654336
  %v118 = vsel %vm116, %v78, 0
  %v121 = vsel %vm116, %v79, 0
  %v124 = vsel %vm116, %v80, 0
  %v127 = vsel %vm116, %v81, 0
  %v130 = vsel %vm116, %v82, 0
  %v133 = vsel %vm116, %v83, 0
  %v136 = vsel %vm116, %v84, 0
  %v139 = vsel %vm116, %v85, 0
  %141 = vmatprep.subr.bf16.mxu0 0
  %142 = vmatpush1.bf16.msra.mxu0 %v106
  %143 = vmatprep.subr.bf16.mxu0 0
  %144 = vmatpush1.bf16.msra.mxu0 %v107
  %145 = vmatprep.subr.bf16.mxu0 0
  %146 = vmatpush1.bf16.msra.mxu0 %v108
  %147 = vmatprep.subr.bf16.mxu0 0
  %148 = vmatpush1.bf16.msra.mxu0 %v109
  %149 = vmatprep.subr.bf16.mxu0 0
  %150 = vmatpush1.bf16.msra.mxu0 %v110
  %151 = vmatprep.subr.bf16.mxu0 0
  %152 = vmatpush1.bf16.msra.mxu0 0
  %153 = vmatprep.subr.bf16.mxu0 0
  %154 = vmatpush1.bf16.msra.mxu0 0
  %155 = vmatprep.subr.bf16.mxu0 0
  %156 = vmatpush1.bf16.msra.mxu0 0
  %157 = vmatprep.subr.bf16.mxu0 0
  %158 = vmatpush1.bf16.msra.mxu0 0
  %159 = vmatprep.subr.bf16.mxu0 0
  %160 = vmatpush1.bf16.msra.mxu0 0
  %161 = vmatprep.subr.bf16.mxu0 0
  %162 = vmatpush1.bf16.msra.mxu0 0
  %163 = vmatprep.subr.bf16.mxu0 0
  %164 = vmatpush1.bf16.msra.mxu0 0
  %165 = vmatprep.subr.bf16.mxu0 0
  %166 = vmatpush1.bf16.msra.mxu0 0
  %167 = vmatprep.subr.bf16.mxu0 0
  %168 = vmatpush1.bf16.msra.mxu0 0
  %169 = vmatprep.subr.bf16.mxu0 0
  %170 = vmatpush1.bf16.msra.mxu0 0
  %171 = vmatprep.subr.bf16.mxu0 0
  %172 = vmatpush1.bf16.msra.mxu0 0
  %173 = vmatprep.mubr.bf16.mxu0 0
  %174 = vmatmul.mubr.bf16.gmra.mrb[0].mxu0 %v118
  %v175 = vpop.f32.mrb[0].mxu0
  %v176 = vadd.f32 %v45, %v175
  %v177 = vpop.f32.mrb[0].mxu0
  %v178 = vpop.f32.mrb[0].mxu0
  %v179 = vadd.f32 %v45, %v178
  %v180 = vpop.f32.mrb[0].mxu0
  %181 = vmatprep.mubr.bf16.mxu0 0
  %182 = vmatmul.mubr.bf16.gmra.mrb[0].mxu0 %v121
  %v183 = vpop.f32.mrb[0].mxu0
  %v184 = vadd.f32 %v45, %v183
  %v185 = vpop.f32.mrb[0].mxu0
  %v186 = vpop.f32.mrb[0].mxu0
  %v187 = vadd.f32 %v45, %v186
  %v188 = vpop.f32.mrb[0].mxu0
  %189 = vmatprep.mubr.bf16.mxu0 0
  %190 = vmatmul.mubr.bf16.gmra.mrb[0].mxu0 %v124
  %v191 = vpop.f32.mrb[0].mxu0
  %v192 = vadd.f32 %v45, %v191
  %v193 = vpop.f32.mrb[0].mxu0
  %v194 = vpop.f32.mrb[0].mxu0
  %v195 = vadd.f32 %v45, %v194
  %v196 = vpop.f32.mrb[0].mxu0
  %197 = vmatprep.mubr.bf16.mxu0 0
  %198 = vmatmul.mubr.bf16.gmra.mrb[0].mxu0 %v127
  %v199 = vpop.f32.mrb[0].mxu0
  %v200 = vadd.f32 %v45, %v199
  %v201 = vpop.f32.mrb[0].mxu0
  %v202 = vpop.f32.mrb[0].mxu0
  %v203 = vadd.f32 %v45, %v202
  %v204 = vpop.f32.mrb[0].mxu0
  %205 = vmatprep.mubr.bf16.mxu0 0
  %206 = vmatmul.mubr.bf16.gmra.mrb[0].mxu0 %v130
  %v207 = vpop.f32.mrb[0].mxu0
  %v208 = vadd.f32 %v45, %v207
  %v209 = vpop.f32.mrb[0].mxu0
  %v210 = vpop.f32.mrb[0].mxu0
  %v211 = vadd.f32 %v45, %v210
  %v212 = vpop.f32.mrb[0].mxu0
  %213 = vmatprep.mubr.bf16.mxu0 0
  %214 = vmatmul.mubr.bf16.gmra.mrb[0].mxu0 %v133
  %v215 = vpop.f32.mrb[0].mxu0
  %v216 = vadd.f32 %v45, %v215
  %v217 = vpop.f32.mrb[0].mxu0
  %v218 = vpop.f32.mrb[0].mxu0
  %v219 = vadd.f32 %v45, %v218
  %v220 = vpop.f32.mrb[0].mxu0
  %221 = vmatprep.mubr.bf16.mxu0 0
  %222 = vmatmul.mubr.bf16.gmra.mrb[0].mxu0 %v136
  %v223 = vpop.f32.mrb[0].mxu0
  %v224 = vadd.f32 %v45, %v223
  %v225 = vpop.f32.mrb[0].mxu0
  %v226 = vpop.f32.mrb[0].mxu0
  %v227 = vadd.f32 %v45, %v226
  %v228 = vpop.f32.mrb[0].mxu0
  %229 = vmatprep.mubr.bf16.mxu0 0
  %230 = vmatmul.mubr.bf16.gmra.mrb[0].mxu0 %v139
  %v231 = vpop.f32.mrb[0].mxu0
  %v232 = vadd.f32 %v45, %v231
  %v233 = vpop.f32.mrb[0].mxu0
  %v234 = vpop.f32.mrb[0].mxu0
  %v235 = vadd.f32 %v45, %v234
  %v236 = vpop.f32.mrb[0].mxu0
  %237 = vdwg.mxu0
  %v238 = vmul.f32 %v176, 0.5
  %v239 = vmul.f32 %v179, 0.5
  %v240 = vmul.f32 %v184, 0.5
  %v241 = vmul.f32 %v187, 0.5
  %v242 = vmul.f32 %v192, 0.5
  %v243 = vmul.f32 %v195, 0.5
  %v244 = vmul.f32 %v200, 0.5
  %v245 = vmul.f32 %v203, 0.5
  %v246 = vmul.f32 %v208, 0.5
  %v247 = vmul.f32 %v211, 0.5
  %v248 = vmul.f32 %v216, 0.5
  %v249 = vmul.f32 %v219, 0.5
  %v250 = vmul.f32 %v224, 0.5
  %v251 = vmul.f32 %v227, 0.5
  %v252 = vmul.f32 %v232, 0.5
  %v253 = vmul.f32 %v235, 0.5
  %v254 = vmul.f32 %v176, 0.70710677
  %v255 = vmul.f32 %v179, 0.70710677
  %v256 = vmul.f32 %v184, 0.70710677
  %v257 = vmul.f32 %v187, 0.70710677
  %v258 = vmul.f32 %v192, 0.70710677
  %v259 = vmul.f32 %v195, 0.70710677
  %v260 = vmul.f32 %v200, 0.70710677
  %v261 = vmul.f32 %v203, 0.70710677
  %v262 = vmul.f32 %v208, 0.70710677
  %v263 = vmul.f32 %v211, 0.70710677
  %v264 = vmul.f32 %v216, 0.70710677
  %v265 = vmul.f32 %v219, 0.70710677
  %v266 = vmul.f32 %v224, 0.70710677
  %v267 = vmul.f32 %v227, 0.70710677
  %v268 = vmul.f32 %v232, 0.70710677
  %v269 = vmul.f32 %v235, 0.70710677
  %v270 = vand.u32 2147483647, %v254
  %v271 = vand.u32 2147483647, %v255
  %v272 = vand.u32 2147483647, %v256
  %v273 = vand.u32 2147483647, %v257
  %v274 = vand.u32 2147483647, %v258
  %v275 = vand.u32 2147483647, %v259
  %v276 = vand.u32 2147483647, %v260
  %v277 = vand.u32 2147483647, %v261
  %v278 = vand.u32 2147483647, %v262
  %v279 = vand.u32 2147483647, %v263
  %v280 = vand.u32 2147483647, %v264
  %v281 = vand.u32 2147483647, %v265
  %v282 = vand.u32 2147483647, %v266
  %v283 = vand.u32 2147483647, %v267
  %v284 = vand.u32 2147483647, %v268
  %v285 = vand.u32 2147483647, %v269
  %v286 = vmul.f32 %v270, 0.3275911
  %v287 = vmul.f32 %v271, 0.3275911
  %v288 = vmul.f32 %v272, 0.3275911
  %v289 = vmul.f32 %v273, 0.3275911
  %v290 = vmul.f32 %v274, 0.3275911
  %v291 = vmul.f32 %v275, 0.3275911
  %v292 = vmul.f32 %v276, 0.3275911
  %v293 = vmul.f32 %v277, 0.3275911
  %v294 = vmul.f32 %v278, 0.3275911
  %v295 = vmul.f32 %v279, 0.3275911
  %v296 = vmul.f32 %v280, 0.3275911
  %v297 = vmul.f32 %v281, 0.3275911
  %v298 = vmul.f32 %v282, 0.3275911
  %v299 = vmul.f32 %v283, 0.3275911
  %v300 = vmul.f32 %v284, 0.3275911
  %v301 = vmul.f32 %v285, 0.3275911
  %v302 = vadd.f32 %v286, 1.0
  %v303 = vadd.f32 %v287, 1.0
  %v304 = vadd.f32 %v288, 1.0
  %v305 = vadd.f32 %v289, 1.0
  %v306 = vadd.f32 %v290, 1.0
  %v307 = vadd.f32 %v291, 1.0
  %v308 = vadd.f32 %v292, 1.0
  %v309 = vadd.f32 %v293, 1.0
  %v310 = vadd.f32 %v294, 1.0
  %v311 = vadd.f32 %v295, 1.0
  %v312 = vadd.f32 %v296, 1.0
  %v313 = vadd.f32 %v297, 1.0
  %v314 = vadd.f32 %v298, 1.0
  %v315 = vadd.f32 %v299, 1.0
  %v316 = vadd.f32 %v300, 1.0
  %v317 = vadd.f32 %v301, 1.0
  %v318 = vrcp.pop %v302
  %v319 = vmul.f32 1.0, %v318
  %v320 = vrcp.pop %v303
  %v321 = vmul.f32 1.0, %v320
  %v322 = vrcp.pop %v304
  %v323 = vmul.f32 1.0, %v322
  %v324 = vrcp.pop %v305
  %v325 = vmul.f32 1.0, %v324
  %v326 = vrcp.pop %v306
  %v327 = vmul.f32 1.0, %v326
  %v328 = vrcp.pop %v307
  %v329 = vmul.f32 1.0, %v328
  %v330 = vrcp.pop %v308
  %v331 = vmul.f32 1.0, %v330
  %v332 = vrcp.pop %v309
  %v333 = vmul.f32 1.0, %v332
  %v334 = vrcp.pop %v310
  %v335 = vmul.f32 1.0, %v334
  %v336 = vrcp.pop %v311
  %v337 = vmul.f32 1.0, %v336
  %v338 = vrcp.pop %v312
  %v339 = vmul.f32 1.0, %v338
  %v340 = vrcp.pop %v313
  %v341 = vmul.f32 1.0, %v340
  %v342 = vrcp.pop %v314
  %v343 = vmul.f32 1.0, %v342
  %v344 = vrcp.pop %v315
  %v345 = vmul.f32 1.0, %v344
  %v346 = vrcp.pop %v316
  %v347 = vmul.f32 1.0, %v346
  %v348 = vrcp.pop %v317
  %v349 = vmul.f32 1.0, %v348
  %v350 = vmul.f32 %v319, 1.0614054
  %v351 = vmul.f32 %v321, 1.0614054
  %v352 = vmul.f32 %v323, 1.0614054
  %v353 = vmul.f32 %v325, 1.0614054
  %v354 = vmul.f32 %v327, 1.0614054
  %v355 = vmul.f32 %v329, 1.0614054
  %v356 = vmul.f32 %v331, 1.0614054
  %v357 = vmul.f32 %v333, 1.0614054
  %v358 = vmul.f32 %v335, 1.0614054
  %v359 = vmul.f32 %v337, 1.0614054
  %v360 = vmul.f32 %v339, 1.0614054
  %v361 = vmul.f32 %v341, 1.0614054
  %v362 = vmul.f32 %v343, 1.0614054
  %v363 = vmul.f32 %v345, 1.0614054
  %v364 = vmul.f32 %v347, 1.0614054
  %v365 = vmul.f32 %v349, 1.0614054
  %v366 = vadd.f32 %v350, -1.4531521
  %v367 = vadd.f32 %v351, -1.4531521
  %v368 = vadd.f32 %v352, -1.4531521
  %v369 = vadd.f32 %v353, -1.4531521
  %v370 = vadd.f32 %v354, -1.4531521
  %v371 = vadd.f32 %v355, -1.4531521
  %v372 = vadd.f32 %v356, -1.4531521
  %v373 = vadd.f32 %v357, -1.4531521
  %v374 = vadd.f32 %v358, -1.4531521
  %v375 = vadd.f32 %v359, -1.4531521
  %v376 = vadd.f32 %v360, -1.4531521
  %v377 = vadd.f32 %v361, -1.4531521
  %v378 = vadd.f32 %v362, -1.4531521
  %v379 = vadd.f32 %v363, -1.4531521
  %v380 = vadd.f32 %v364, -1.4531521
  %v381 = vadd.f32 %v365, -1.4531521
  %v382 = vmul.f32 %v366, %v319
  %v383 = vmul.f32 %v367, %v321
  %v384 = vmul.f32 %v368, %v323
  %v385 = vmul.f32 %v369, %v325
  %v386 = vmul.f32 %v370, %v327
  %v387 = vmul.f32 %v371, %v329
  %v388 = vmul.f32 %v372, %v331
  %v389 = vmul.f32 %v373, %v333
  %v390 = vmul.f32 %v374, %v335
  %v391 = vmul.f32 %v375, %v337
  %v392 = vmul.f32 %v376, %v339
  %v393 = vmul.f32 %v377, %v341
  %v394 = vmul.f32 %v378, %v343
  %v395 = vmul.f32 %v379, %v345
  %v396 = vmul.f32 %v380, %v347
  %v397 = vmul.f32 %v381, %v349
  %v398 = vadd.f32 %v382, 1.4214138
  %v399 = vadd.f32 %v383, 1.4214138
  %v400 = vadd.f32 %v384, 1.4214138
  %v401 = vadd.f32 %v385, 1.4214138
  %v402 = vadd.f32 %v386, 1.4214138
  %v403 = vadd.f32 %v387, 1.4214138
  %v404 = vadd.f32 %v388, 1.4214138
  %v405 = vadd.f32 %v389, 1.4214138
  %v406 = vadd.f32 %v390, 1.4214138
  %v407 = vadd.f32 %v391, 1.4214138
  %v408 = vadd.f32 %v392, 1.4214138
  %v409 = vadd.f32 %v393, 1.4214138
  %v410 = vadd.f32 %v394, 1.4214138
  %v411 = vadd.f32 %v395, 1.4214138
  %v412 = vadd.f32 %v396, 1.4214138
  %v413 = vadd.f32 %v397, 1.4214138
  %v414 = vmul.f32 %v398, %v319
  %v415 = vmul.f32 %v399, %v321
  %v416 = vmul.f32 %v400, %v323
  %v417 = vmul.f32 %v401, %v325
  %v418 = vmul.f32 %v402, %v327
  %v419 = vmul.f32 %v403, %v329
  %v420 = vmul.f32 %v404, %v331
  %v421 = vmul.f32 %v405, %v333
  %v422 = vmul.f32 %v406, %v335
  %v423 = vmul.f32 %v407, %v337
  %v424 = vmul.f32 %v408, %v339
  %v425 = vmul.f32 %v409, %v341
  %v426 = vmul.f32 %v410, %v343
  %v427 = vmul.f32 %v411, %v345
  %v428 = vmul.f32 %v412, %v347
  %v429 = vmul.f32 %v413, %v349
  %v430 = vadd.f32 %v414, -0.28449672
  %v431 = vadd.f32 %v415, -0.28449672
  %v432 = vadd.f32 %v416, -0.28449672
  %v433 = vadd.f32 %v417, -0.28449672
  %v434 = vadd.f32 %v418, -0.28449672
  %v435 = vadd.f32 %v419, -0.28449672
  %v436 = vadd.f32 %v420, -0.28449672
  %v437 = vadd.f32 %v421, -0.28449672
  %v438 = vadd.f32 %v422, -0.28449672
  %v439 = vadd.f32 %v423, -0.28449672
  %v440 = vadd.f32 %v424, -0.28449672
  %v441 = vadd.f32 %v425, -0.28449672
  %v442 = vadd.f32 %v426, -0.28449672
  %v443 = vadd.f32 %v427, -0.28449672
  %v444 = vadd.f32 %v428, -0.28449672
  %v445 = vadd.f32 %v429, -0.28449672
  %v446 = vmul.f32 %v430, %v319
  %v447 = vmul.f32 %v431, %v321
  %v448 = vmul.f32 %v432, %v323
  %v449 = vmul.f32 %v433, %v325
  %v450 = vmul.f32 %v434, %v327
  %v451 = vmul.f32 %v435, %v329
  %v452 = vmul.f32 %v436, %v331
  %v453 = vmul.f32 %v437, %v333
  %v454 = vmul.f32 %v438, %v335
  %v455 = vmul.f32 %v439, %v337
  %v456 = vmul.f32 %v440, %v339
  %v457 = vmul.f32 %v441, %v341
  %v458 = vmul.f32 %v442, %v343
  %v459 = vmul.f32 %v443, %v345
  %v460 = vmul.f32 %v444, %v347
  %v461 = vmul.f32 %v445, %v349
  %v462 = vadd.f32 %v446, 0.2548296
  %v463 = vadd.f32 %v447, 0.2548296
  %v464 = vadd.f32 %v448, 0.2548296
  %v465 = vadd.f32 %v449, 0.2548296
  %v466 = vadd.f32 %v450, 0.2548296
  %v467 = vadd.f32 %v451, 0.2548296
  %v468 = vadd.f32 %v452, 0.2548296
  %v469 = vadd.f32 %v453, 0.2548296
  %v470 = vadd.f32 %v454, 0.2548296
  %v471 = vadd.f32 %v455, 0.2548296
  %v472 = vadd.f32 %v456, 0.2548296
  %v473 = vadd.f32 %v457, 0.2548296
  %v474 = vadd.f32 %v458, 0.2548296
  %v475 = vadd.f32 %v459, 0.2548296
  %v476 = vadd.f32 %v460, 0.2548296
  %v477 = vadd.f32 %v461, 0.2548296
  %v478 = vmul.f32 %v462, %v319
  %v479 = vmul.f32 %v463, %v321
  %v480 = vmul.f32 %v464, %v323
  %v481 = vmul.f32 %v465, %v325
  %v482 = vmul.f32 %v466, %v327
  %v483 = vmul.f32 %v467, %v329
  %v484 = vmul.f32 %v468, %v331
  %v485 = vmul.f32 %v469, %v333
  %v486 = vmul.f32 %v470, %v335
  %v487 = vmul.f32 %v471, %v337
  %v488 = vmul.f32 %v472, %v339
  %v489 = vmul.f32 %v473, %v341
  %v490 = vmul.f32 %v474, %v343
  %v491 = vmul.f32 %v475, %v345
  %v492 = vmul.f32 %v476, %v347
  %v493 = vmul.f32 %v477, %v349
  %v494 = vmul.f32 %v270, %v270
  %v495 = vmul.f32 %v271, %v271
  %v496 = vmul.f32 %v272, %v272
  %v497 = vmul.f32 %v273, %v273
  %v498 = vmul.f32 %v274, %v274
  %v499 = vmul.f32 %v275, %v275
  %v500 = vmul.f32 %v276, %v276
  %v501 = vmul.f32 %v277, %v277
  %v502 = vmul.f32 %v278, %v278
  %v503 = vmul.f32 %v279, %v279
  %v504 = vmul.f32 %v280, %v280
  %v505 = vmul.f32 %v281, %v281
  %v506 = vmul.f32 %v282, %v282
  %v507 = vmul.f32 %v283, %v283
  %v508 = vmul.f32 %v284, %v284
  %v509 = vmul.f32 %v285, %v285
  %v510 = vsub.f32 0.0, %v494
  %v511 = vsub.f32 0.0, %v495
  %v512 = vsub.f32 0.0, %v496
  %v513 = vsub.f32 0.0, %v497
  %v514 = vsub.f32 0.0, %v498
  %v515 = vsub.f32 0.0, %v499
  %v516 = vsub.f32 0.0, %v500
  %v517 = vsub.f32 0.0, %v501
  %v518 = vsub.f32 0.0, %v502
  %v519 = vsub.f32 0.0, %v503
  %v520 = vsub.f32 0.0, %v504
  %v521 = vsub.f32 0.0, %v505
  %v522 = vsub.f32 0.0, %v506
  %v523 = vsub.f32 0.0, %v507
  %v524 = vsub.f32 0.0, %v508
  %v525 = vsub.f32 0.0, %v509
  %v526 = vmul.f32 %v510, 1.442695
  %v527 = vpow.pop %v526
  %v528 = vmul.f32 %v511, 1.442695
  %v529 = vpow.pop %v528
  %v530 = vmul.f32 %v512, 1.442695
  %v531 = vpow.pop %v530
  %v532 = vmul.f32 %v513, 1.442695
  %v533 = vpow.pop %v532
  %v534 = vmul.f32 %v514, 1.442695
  %v535 = vpow.pop %v534
  %v536 = vmul.f32 %v515, 1.442695
  %v537 = vpow.pop %v536
  %v538 = vmul.f32 %v516, 1.442695
  %v539 = vpow.pop %v538
  %v540 = vmul.f32 %v517, 1.442695
  %v541 = vpow.pop %v540
  %v542 = vmul.f32 %v518, 1.442695
  %v543 = vpow.pop %v542
  %v544 = vmul.f32 %v519, 1.442695
  %v545 = vpow.pop %v544
  %v546 = vmul.f32 %v520, 1.442695
  %v547 = vpow.pop %v546
  %v548 = vmul.f32 %v521, 1.442695
  %v549 = vpow.pop %v548
  %v550 = vmul.f32 %v522, 1.442695
  %v551 = vpow.pop %v550
  %v552 = vmul.f32 %v523, 1.442695
  %v553 = vpow.pop %v552
  %v554 = vmul.f32 %v524, 1.442695
  %v555 = vpow.pop %v554
  %v556 = vmul.f32 %v525, 1.442695
  %v557 = vpow.pop %v556
  %v558 = vmul.f32 %v478, %v527
  %v559 = vmul.f32 %v479, %v529
  %v560 = vmul.f32 %v480, %v531
  %v561 = vmul.f32 %v481, %v533
  %v562 = vmul.f32 %v482, %v535
  %v563 = vmul.f32 %v483, %v537
  %v564 = vmul.f32 %v484, %v539
  %v565 = vmul.f32 %v485, %v541
  %v566 = vmul.f32 %v486, %v543
  %v567 = vmul.f32 %v487, %v545
  %v568 = vmul.f32 %v488, %v547
  %v569 = vmul.f32 %v489, %v549
  %v570 = vmul.f32 %v490, %v551
  %v571 = vmul.f32 %v491, %v553
  %v572 = vmul.f32 %v492, %v555
  %v573 = vmul.f32 %v493, %v557
  %v574 = vsub.f32 1.0, %v558
  %v575 = vsub.f32 1.0, %v559
  %v576 = vsub.f32 1.0, %v560
  %v577 = vsub.f32 1.0, %v561
  %v578 = vsub.f32 1.0, %v562
  %v579 = vsub.f32 1.0, %v563
  %v580 = vsub.f32 1.0, %v564
  %v581 = vsub.f32 1.0, %v565
  %v582 = vsub.f32 1.0, %v566
  %v583 = vsub.f32 1.0, %v567
  %v584 = vsub.f32 1.0, %v568
  %v585 = vsub.f32 1.0, %v569
  %v586 = vsub.f32 1.0, %v570
  %v587 = vsub.f32 1.0, %v571
  %v588 = vsub.f32 1.0, %v572
  %v589 = vsub.f32 1.0, %v573
  %vm590 = vcmp.ge.f32.partialorder %v254, 0.0
  %vm591 = vcmp.ge.f32.partialorder %v255, 0.0
  %vm592 = vcmp.ge.f32.partialorder %v256, 0.0
  %vm593 = vcmp.ge.f32.partialorder %v257, 0.0
  %vm594 = vcmp.ge.f32.partialorder %v258, 0.0
  %vm595 = vcmp.ge.f32.partialorder %v259, 0.0
  %vm596 = vcmp.ge.f32.partialorder %v260, 0.0
  %vm597 = vcmp.ge.f32.partialorder %v261, 0.0
  %vm598 = vcmp.ge.f32.partialorder %v262, 0.0
  %vm599 = vcmp.ge.f32.partialorder %v263, 0.0
  %vm600 = vcmp.ge.f32.partialorder %v264, 0.0
  %vm601 = vcmp.ge.f32.partialorder %v265, 0.0
  %vm602 = vcmp.ge.f32.partialorder %v266, 0.0
  %vm603 = vcmp.ge.f32.partialorder %v267, 0.0
  %vm604 = vcmp.ge.f32.partialorder %v268, 0.0
  %vm605 = vcmp.ge.f32.partialorder %v269, 0.0
  %v606 = vsub.f32 0.0, %v574
  %v607 = vsub.f32 0.0, %v575
  %v608 = vsub.f32 0.0, %v576
  %v609 = vsub.f32 0.0, %v577
  %v610 = vsub.f32 0.0, %v578
  %v611 = vsub.f32 0.0, %v579
  %v612 = vsub.f32 0.0, %v580
  %v613 = vsub.f32 0.0, %v581
  %v614 = vsub.f32 0.0, %v582
  %v615 = vsub.f32 0.0, %v583
  %v616 = vsub.f32 0.0, %v584
  %v617 = vsub.f32 0.0, %v585
  %v618 = vsub.f32 0.0, %v586
  %v619 = vsub.f32 0.0, %v587
  %v620 = vsub.f32 0.0, %v588
  %v621 = vsub.f32 0.0, %v589
  %v622 = vsel %vm590, %v574, %v606
  %v623 = vsel %vm591, %v575, %v607
  %v624 = vsel %vm592, %v576, %v608
  %v625 = vsel %vm593, %v577, %v609
  %v626 = vsel %vm594, %v578, %v610
  %v627 = vsel %vm595, %v579, %v611
  %v628 = vsel %vm596, %v580, %v612
  %v629 = vsel %vm597, %v581, %v613
  %v630 = vsel %vm598, %v582, %v614
  %v631 = vsel %vm599, %v583, %v615
  %v632 = vsel %vm600, %v584, %v616
  %v633 = vsel %vm601, %v585, %v617
  %v634 = vsel %vm602, %v586, %v618
  %v635 = vsel %vm603, %v587, %v619
  %v636 = vsel %vm604, %v588, %v620
  %v637 = vsel %vm605, %v589, %v621
  %v638 = vadd.f32 %v622, 1.0
  %v639 = vadd.f32 %v623, 1.0
  %v640 = vadd.f32 %v624, 1.0
  %v641 = vadd.f32 %v625, 1.0
  %v642 = vadd.f32 %v626, 1.0
  %v643 = vadd.f32 %v627, 1.0
  %v644 = vadd.f32 %v628, 1.0
  %v645 = vadd.f32 %v629, 1.0
  %v646 = vadd.f32 %v630, 1.0
  %v647 = vadd.f32 %v631, 1.0
  %v648 = vadd.f32 %v632, 1.0
  %v649 = vadd.f32 %v633, 1.0
  %v650 = vadd.f32 %v634, 1.0
  %v651 = vadd.f32 %v635, 1.0
  %v652 = vadd.f32 %v636, 1.0
  %v653 = vadd.f32 %v637, 1.0
  %v654 = vmul.f32 %v238, %v638
  %v655 = vmul.f32 %v239, %v639
  %v656 = vmul.f32 %v240, %v640
  %v657 = vmul.f32 %v241, %v641
  %v658 = vmul.f32 %v242, %v642
  %v659 = vmul.f32 %v243, %v643
  %v660 = vmul.f32 %v244, %v644
  %v661 = vmul.f32 %v245, %v645
  %v662 = vmul.f32 %v246, %v646
  %v663 = vmul.f32 %v247, %v647
  %v664 = vmul.f32 %v248, %v648
  %v665 = vmul.f32 %v249, %v649
  %v666 = vmul.f32 %v250, %v650
  %v667 = vmul.f32 %v251, %v651
  %v668 = vmul.f32 %v252, %v652
  %v669 = vmul.f32 %v253, %v653
  %670 = vadd.xlane.f32.xlu0 %v654
  %v671 = vpop.xlane.xlu0 %670
  %672 = vadd.xlane.f32.xlu0 %v655
  %v673 = vpop.xlane.xlu0 %672
  %674 = vadd.xlane.f32.xlu0 %v656
  %v675 = vpop.xlane.xlu0 %674
  %676 = vadd.xlane.f32.xlu0 %v657
  %v677 = vpop.xlane.xlu0 %676
  %678 = vadd.xlane.f32.xlu0 %v658
  %v679 = vpop.xlane.xlu0 %678
  %680 = vadd.xlane.f32.xlu0 %v659
  %v681 = vpop.xlane.xlu0 %680
  %682 = vadd.xlane.f32.xlu0 %v660
  %v683 = vpop.xlane.xlu0 %682
  %684 = vadd.xlane.f32.xlu0 %v661
  %v685 = vpop.xlane.xlu0 %684
  %686 = vadd.xlane.f32.xlu0 %v662
  %v687 = vpop.xlane.xlu0 %686
  %688 = vadd.xlane.f32.xlu0 %v663
  %v689 = vpop.xlane.xlu0 %688
  %690 = vadd.xlane.f32.xlu0 %v664
  %v691 = vpop.xlane.xlu0 %690
  %692 = vadd.xlane.f32.xlu0 %v665
  %v693 = vpop.xlane.xlu0 %692
  %694 = vadd.xlane.f32.xlu0 %v666
  %v695 = vpop.xlane.xlu0 %694
  %696 = vadd.xlane.f32.xlu0 %v667
  %v697 = vpop.xlane.xlu0 %696
  %698 = vadd.xlane.f32.xlu0 %v668
  %v699 = vpop.xlane.xlu0 %698
  %700 = vadd.xlane.f32.xlu0 %v669
  %v701 = vpop.xlane.xlu0 %700
  %v702 = vmul.f32 %v671, 0.03125
  %v703 = vmul.f32 %v673, 0.03125
  %v704 = vmul.f32 %v675, 0.03125
  %v705 = vmul.f32 %v677, 0.03125
  %v706 = vmul.f32 %v679, 0.03125
  %v707 = vmul.f32 %v681, 0.03125
  %v708 = vmul.f32 %v683, 0.03125
  %v709 = vmul.f32 %v685, 0.03125
  %v710 = vmul.f32 %v687, 0.03125
  %v711 = vmul.f32 %v689, 0.03125
  %v712 = vmul.f32 %v691, 0.03125
  %v713 = vmul.f32 %v693, 0.03125
  %v714 = vmul.f32 %v695, 0.03125
  %v715 = vmul.f32 %v697, 0.03125
  %v716 = vmul.f32 %v699, 0.03125
  %v717 = vmul.f32 %v701, 0.03125
  %v718 = vsub.f32 %v654, %v702
  %v719 = vsub.f32 %v655, %v703
  %v720 = vsub.f32 %v656, %v704
  %v721 = vsub.f32 %v657, %v705
  %v722 = vsub.f32 %v658, %v706
  %v723 = vsub.f32 %v659, %v707
  %v724 = vsub.f32 %v660, %v708
  %v725 = vsub.f32 %v661, %v709
  %v726 = vsub.f32 %v662, %v710
  %v727 = vsub.f32 %v663, %v711
  %v728 = vsub.f32 %v664, %v712
  %v729 = vsub.f32 %v665, %v713
  %v730 = vsub.f32 %v666, %v714
  %v731 = vsub.f32 %v667, %v715
  %v732 = vsub.f32 %v668, %v716
  %v733 = vsub.f32 %v669, %v717
  %v734 = vmul.f32 %v718, %v718
  %v735 = vmul.f32 %v719, %v719
  %v736 = vmul.f32 %v720, %v720
  %v737 = vmul.f32 %v721, %v721
  %v738 = vmul.f32 %v722, %v722
  %v739 = vmul.f32 %v723, %v723
  %v740 = vmul.f32 %v724, %v724
  %v741 = vmul.f32 %v725, %v725
  %v742 = vmul.f32 %v726, %v726
  %v743 = vmul.f32 %v727, %v727
  %v744 = vmul.f32 %v728, %v728
  %v745 = vmul.f32 %v729, %v729
  %v746 = vmul.f32 %v730, %v730
  %v747 = vmul.f32 %v731, %v731
  %v748 = vmul.f32 %v732, %v732
  %v749 = vmul.f32 %v733, %v733
  %750 = vadd.xlane.f32.xlu0 %v734
  %v751 = vpop.xlane.xlu0 %750
  %752 = vadd.xlane.f32.xlu0 %v735
  %v753 = vpop.xlane.xlu0 %752
  %754 = vadd.xlane.f32.xlu0 %v736
  %v755 = vpop.xlane.xlu0 %754
  %756 = vadd.xlane.f32.xlu0 %v737
  %v757 = vpop.xlane.xlu0 %756
  %758 = vadd.xlane.f32.xlu0 %v738
  %v759 = vpop.xlane.xlu0 %758
  %760 = vadd.xlane.f32.xlu0 %v739
  %v761 = vpop.xlane.xlu0 %760
  %762 = vadd.xlane.f32.xlu0 %v740
  %v763 = vpop.xlane.xlu0 %762
  %764 = vadd.xlane.f32.xlu0 %v741
  %v765 = vpop.xlane.xlu0 %764
  %766 = vadd.xlane.f32.xlu0 %v742
  %v767 = vpop.xlane.xlu0 %766
  %768 = vadd.xlane.f32.xlu0 %v743
  %v769 = vpop.xlane.xlu0 %768
  %770 = vadd.xlane.f32.xlu0 %v744
  %v771 = vpop.xlane.xlu0 %770
  %772 = vadd.xlane.f32.xlu0 %v745
  %v773 = vpop.xlane.xlu0 %772
  %774 = vadd.xlane.f32.xlu0 %v746
  %v775 = vpop.xlane.xlu0 %774
  %776 = vadd.xlane.f32.xlu0 %v747
  %v777 = vpop.xlane.xlu0 %776
  %778 = vadd.xlane.f32.xlu0 %v748
  %v779 = vpop.xlane.xlu0 %778
  %780 = vadd.xlane.f32.xlu0 %v749
  %v781 = vpop.xlane.xlu0 %780
  %v782 = vmul.f32 %v702, %v702
  %v783 = vmul.f32 %v703, %v703
  %v784 = vmul.f32 %v704, %v704
  %v785 = vmul.f32 %v705, %v705
  %v786 = vmul.f32 %v706, %v706
  %v787 = vmul.f32 %v707, %v707
  %v788 = vmul.f32 %v708, %v708
  %v789 = vmul.f32 %v709, %v709
  %v790 = vmul.f32 %v710, %v710
  %v791 = vmul.f32 %v711, %v711
  %v792 = vmul.f32 %v712, %v712
  %v793 = vmul.f32 %v713, %v713
  %v794 = vmul.f32 %v714, %v714
  %v795 = vmul.f32 %v715, %v715
  %v796 = vmul.f32 %v716, %v716
  %v797 = vmul.f32 %v717, %v717
  %v798 = vmul.f32 %v782, 96.0
  %v799 = vmul.f32 %v783, 96.0
  %v800 = vmul.f32 %v784, 96.0
  %v801 = vmul.f32 %v785, 96.0
  %v802 = vmul.f32 %v786, 96.0
  %v803 = vmul.f32 %v787, 96.0
  %v804 = vmul.f32 %v788, 96.0
  %v805 = vmul.f32 %v789, 96.0
  %v806 = vmul.f32 %v790, 96.0
  %v807 = vmul.f32 %v791, 96.0
  %v808 = vmul.f32 %v792, 96.0
  %v809 = vmul.f32 %v793, 96.0
  %v810 = vmul.f32 %v794, 96.0
  %v811 = vmul.f32 %v795, 96.0
  %v812 = vmul.f32 %v796, 96.0
  %v813 = vmul.f32 %v797, 96.0
  %v814 = vsub.f32 %v751, %v798
  %v815 = vsub.f32 %v753, %v799
  %v816 = vsub.f32 %v755, %v800
  %v817 = vsub.f32 %v757, %v801
  %v818 = vsub.f32 %v759, %v802
  %v819 = vsub.f32 %v761, %v803
  %v820 = vsub.f32 %v763, %v804
  %v821 = vsub.f32 %v765, %v805
  %v822 = vsub.f32 %v767, %v806
  %v823 = vsub.f32 %v769, %v807
  %v824 = vsub.f32 %v771, %v808
  %v825 = vsub.f32 %v773, %v809
  %v826 = vsub.f32 %v775, %v810
  %v827 = vsub.f32 %v777, %v811
  %v828 = vsub.f32 %v779, %v812
  %v829 = vsub.f32 %v781, %v813
  %v830 = vmul.f32 %v814, 0.03125
  %v831 = vmul.f32 %v815, 0.03125
  %v832 = vmul.f32 %v816, 0.03125
  %v833 = vmul.f32 %v817, 0.03125
  %v834 = vmul.f32 %v818, 0.03125
  %v835 = vmul.f32 %v819, 0.03125
  %v836 = vmul.f32 %v820, 0.03125
  %v837 = vmul.f32 %v821, 0.03125
  %v838 = vmul.f32 %v822, 0.03125
  %v839 = vmul.f32 %v823, 0.03125
  %v840 = vmul.f32 %v824, 0.03125
  %v841 = vmul.f32 %v825, 0.03125
  %v842 = vmul.f32 %v826, 0.03125
  %v843 = vmul.f32 %v827, 0.03125
  %v844 = vmul.f32 %v828, 0.03125
  %v845 = vmul.f32 %v829, 0.03125
  %v846 = vadd.f32 %v830, 1e-05
  %v847 = vadd.f32 %v831, 1e-05
  %v848 = vadd.f32 %v832, 1e-05
  %v849 = vadd.f32 %v833, 1e-05
  %v850 = vadd.f32 %v834, 1e-05
  %v851 = vadd.f32 %v835, 1e-05
  %v852 = vadd.f32 %v836, 1e-05
  %v853 = vadd.f32 %v837, 1e-05
  %v854 = vadd.f32 %v838, 1e-05
  %v855 = vadd.f32 %v839, 1e-05
  %v856 = vadd.f32 %v840, 1e-05
  %v857 = vadd.f32 %v841, 1e-05
  %v858 = vadd.f32 %v842, 1e-05
  %v859 = vadd.f32 %v843, 1e-05
  %v860 = vadd.f32 %v844, 1e-05
  %v861 = vadd.f32 %v845, 1e-05
  %v862 = vrsqrt.pop %v846
  %v863 = vrsqrt.pop %v847
  %v864 = vrsqrt.pop %v848
  %v865 = vrsqrt.pop %v849
  %v866 = vrsqrt.pop %v850
  %v867 = vrsqrt.pop %v851
  %v868 = vrsqrt.pop %v852
  %v869 = vrsqrt.pop %v853
  %v870 = vrsqrt.pop %v854
  %v871 = vrsqrt.pop %v855
  %v872 = vrsqrt.pop %v856
  %v873 = vrsqrt.pop %v857
  %v874 = vrsqrt.pop %v858
  %v875 = vrsqrt.pop %v859
  %v876 = vrsqrt.pop %v860
  %v877 = vrsqrt.pop %v861
  %v878 = vmul.f32 %v718, %v862
  %v879 = vmul.f32 %v719, %v863
  %v880 = vmul.f32 %v720, %v864
  %v881 = vmul.f32 %v721, %v865
  %v882 = vmul.f32 %v722, %v866
  %v883 = vmul.f32 %v723, %v867
  %v884 = vmul.f32 %v724, %v868
  %v885 = vmul.f32 %v725, %v869
  %v886 = vmul.f32 %v726, %v870
  %v887 = vmul.f32 %v727, %v871
  %v888 = vmul.f32 %v728, %v872
  %v889 = vmul.f32 %v729, %v873
  %v890 = vmul.f32 %v730, %v874
  %v891 = vmul.f32 %v731, %v875
  %v892 = vmul.f32 %v732, %v876
  %v893 = vmul.f32 %v733, %v877
  %v894 = vld [vmem:[%s2 + $0x1] sm:$0x1]
  %v895 = vlaneseq
  %v896 = vshrl.u32 %v895, 7
  %v897 = vsub.s32 0, %v896
  %v898 = vrot.slane %v894, %v897
  %v899 = vmul.f32 %v878, %v898
  %v900 = vmul.f32 %v879, %v898
  %v901 = vmul.f32 %v880, %v898
  %v902 = vmul.f32 %v881, %v898
  %v903 = vmul.f32 %v882, %v898
  %v904 = vmul.f32 %v883, %v898
  %v905 = vmul.f32 %v884, %v898
  %v906 = vmul.f32 %v885, %v898
  %v907 = vmul.f32 %v886, %v898
  %v908 = vmul.f32 %v887, %v898
  %v909 = vmul.f32 %v888, %v898
  %v910 = vmul.f32 %v889, %v898
  %v911 = vmul.f32 %v890, %v898
  %v912 = vmul.f32 %v891, %v898
  %v913 = vmul.f32 %v892, %v898
  %v914 = vmul.f32 %v893, %v898
  %v915 = vld [vmem:[%s2 + $0x2] sm:$0x1]
  %v916 = vlaneseq
  %v917 = vshrl.u32 %v916, 7
  %v918 = vsub.s32 0, %v917
  %v919 = vrot.slane %v915, %v918
  %v920 = vadd.f32 %v899, %v919
  %v921 = vadd.f32 %v900, %v919
  %v922 = vadd.f32 %v901, %v919
  %v923 = vadd.f32 %v902, %v919
  %v924 = vadd.f32 %v903, %v919
  %v925 = vadd.f32 %v904, %v919
  %v926 = vadd.f32 %v905, %v919
  %v927 = vadd.f32 %v906, %v919
  %v928 = vadd.f32 %v907, %v919
  %v929 = vadd.f32 %v908, %v919
  %v930 = vadd.f32 %v909, %v919
  %v931 = vadd.f32 %v910, %v919
  %v932 = vadd.f32 %v911, %v919
  %v933 = vadd.f32 %v912, %v919
  %v934 = vadd.f32 %v913, %v919
  %v935 = vadd.f32 %v914, %v919
  %v936 = vpack.c.bf16 %v921, %v920
  %v937 = vpack.c.bf16 %v923, %v922
  %v938 = vpack.c.bf16 %v925, %v924
  %v939 = vpack.c.bf16 %v927, %v926
  %v940 = vpack.c.bf16 %v929, %v928
  %v941 = vpack.c.bf16 %v931, %v930
  %v942 = vpack.c.bf16 %v933, %v932
  %v943 = vpack.c.bf16 %v935, %v934
  %v952 = vunpack.c.l.b16 %v936
  %v953 = vunpack.c.h.b16 %v936
  %v954 = vunpack.c.l.b16 %v937
  %v955 = vunpack.c.h.b16 %v937
  %v956 = vunpack.c.l.b16 %v938
  %v957 = vunpack.c.h.b16 %v938
  %v958 = vunpack.c.l.b16 %v939
  %v959 = vunpack.c.h.b16 %v939
  %v960 = vunpack.c.l.b16 %v940
  %v961 = vunpack.c.h.b16 %v940
  %v962 = vunpack.c.l.b16 %v941
  %v963 = vunpack.c.h.b16 %v941
  %v964 = vunpack.c.l.b16 %v942
  %v965 = vunpack.c.h.b16 %v942
  %v966 = vunpack.c.l.b16 %v943
  %v967 = vunpack.c.h.b16 %v943
  %v968 = vpack.c.b16 %v952, %v952
  %v969 = vpack.c.b16 %v953, %v953
  %v970 = vpack.c.b16 %v954, %v954
  %v971 = vpack.c.b16 %v955, %v955
  %v972 = vpack.c.b16 %v956, %v956
  %v973 = vpack.c.b16 %v957, %v957
  %v974 = vpack.c.b16 %v958, %v958
  %v975 = vpack.c.b16 %v959, %v959
  %v976 = vpack.c.b16 %v960, %v960
  %v977 = vpack.c.b16 %v961, %v961
  %v978 = vpack.c.b16 %v962, %v962
  %v979 = vpack.c.b16 %v963, %v963
  %v980 = vpack.c.b16 %v964, %v964
  %v981 = vpack.c.b16 %v965, %v965
  %v982 = vpack.c.b16 %v966, %v966
  %v983 = vpack.c.b16 %v967, %v967
  %vm1000 = vcmask 257024
  %1001 = vst.msk [vmem:[%s3] sm:$0xf] %vm1000, %v968
  %1002 = vst.msk [vmem:[%s3 + $0x4] sm:$0xf] %vm1000, %v969
  %1003 = vst.msk [vmem:[%s3 + $0x8] sm:$0xf] %vm1000, %v970
  %1004 = vst.msk [vmem:[%s3 + $0xc] sm:$0xf] %vm1000, %v971
  %1005 = vst.msk [vmem:[%s3 + $0x10] sm:$0xf] %vm1000, %v972
  %1006 = vst.msk [vmem:[%s3 + $0x14] sm:$0xf] %vm1000, %v973
  %1007 = vst.msk [vmem:[%s3 + $0x18] sm:$0xf] %vm1000, %v974
  %1008 = vst.msk [vmem:[%s3 + $0x1c] sm:$0xf] %vm1000, %v975
  %1009 = vst.msk [vmem:[%s3 + $0x20] sm:$0xf] %vm1000, %v976
  %1010 = vst.msk [vmem:[%s3 + $0x24] sm:$0xf] %vm1000, %v977
  %1011 = vst.msk [vmem:[%s3 + $0x28] sm:$0xf] %vm1000, %v978
  %1012 = vst.msk [vmem:[%s3 + $0x2c] sm:$0xf] %vm1000, %v979
  %1013 = vst.msk [vmem:[%s3 + $0x30] sm:$0xf] %vm1000, %v980
  %1014 = vst.msk [vmem:[%s3 + $0x34] sm:$0xf] %vm1000, %v981
  %1015 = vst.msk [vmem:[%s3 + $0x38] sm:$0xf] %vm1000, %v982
  %1016 = vst.msk [vmem:[%s3 + $0x3c] sm:$0xf] %vm1000, %v983
  // Predicated region
  $region14: #{sourcetype_embedding_2d.1} parent=0 // pred_check
    _
  $region15: #{sourcetype_embedding_2d.1} parent=0 // pred_check_branch
    %1018 = sbr.rel (0) target = $region17
  $region16: #{sourcetype_embedding_2d.1} parent=0 // pred_region
    _
  $region17: #{sourcetype_embedding_2d.1} parent=0 // pred_fallthru
    _
  // Predicated region
  $region18: #{sourcetype_embedding_2d.1} parent=0 // pred_check
    _
  $region19: #{sourcetype_embedding_2d.1} parent=0 // pred_check_branch
    %1020 = sbr.rel (0) target = $region21
  $region20: #{sourcetype_embedding_2d.1} parent=0 // pred_region
    _
  $region21: #{sourcetype_embedding_2d.1} parent=0 // pred_fallthru
    _

</llo_original>
